<compile_context>
chip_gen: v5e
topology: v5e:2x2
jax: 0.10.0
libtpu: 0.0.40
codegen_flags: <defaults>
</compile_context>

<pallas_src>
import functools
import math

import jax
import jax.numpy as jnp
import numpy as np
from jax import lax
from jax.experimental import pallas as pl
from jax.experimental.pallas import tpu as pltpu

_LANE = 128
_SUBLANE = 8


def _round_up(x, m):
    return (x + m - 1) // m * m


def _sublane_mult(itemsize):
    # f32 -> 8, bf16 -> 16, int8/fp8 -> 32 (packed rows per sublane).
    return max(_SUBLANE, 32 // max(int(itemsize), 1))


def _tpu_info():
    """(vmem_capacity_bytes, tensorcores_per_chip) with safe fallbacks."""
    vmem = 64 * 1024 * 1024          # conservative default (v7x-like)
    cores = 2
    try:
        info = pltpu.get_tpu_info()
        vmem = int(getattr(info, "vmem_capacity_bytes", vmem))
        cores = int(getattr(info, "num_cores", 0) or 0)
        if cores <= 0:
            # Heuristic: 64 MiB VMEM per core => v7x-style 2-core chip.
            cores = 2 if vmem < 96 * 1024 * 1024 else 1
    except Exception:
        pass
    return vmem, cores


def _block_budget_bytes(vmem_cap):
    # ~8 MiB blocks on 128 MiB-VMEM chips (v5e/v6e), ~3 MiB on 64 MiB (v7x).
    return 8 * 2**20 if vmem_cap >= 96 * 2**20 else 3 * 2**20


def _vmem_limit(vmem_cap, block_bytes, n_blocks=4):
    limit = max(32 * 2**20, n_blocks * block_bytes + 8 * 2**20)
    return min(limit, int(vmem_cap * 0.7))


def _pick_row_tile(m, n_pad, itemsize):
    """Row-tile size (sublane axis) + vmem limit for a (tm, n_pad) block."""
    vmem_cap, cores = _tpu_info()
    budget = _block_budget_bytes(vmem_cap)
    sub = _sublane_mult(itemsize)
    row_bytes = n_pad * itemsize
    m_pad = _round_up(m, sub)
    tm = max(sub, (budget // max(row_bytes, 1)) // sub * sub)
    tm = min(tm, m_pad)
    if cores > 1 and m_pad > sub:
        # Target >= ~8 grid steps (>= 4 per core keeps double-buffering alive)
        # but never shrink blocks below ~1 MiB.
        min_tm = max(sub, ((1 << 20) // max(row_bytes, 1)) // sub * sub)
        steps_cap = _round_up(pl.cdiv(m, 8), sub)
        tm = min(tm, max(steps_cap, min_tm))
        tm = min(tm, m_pad)
    return tm, _vmem_limit(vmem_cap, tm * row_bytes)


def _pick_col_tile(n_rows, m, itemsize):
    """Column-tile size (lane axis) for a (n_rows, tn) resident-rows block."""
    vmem_cap, cores = _tpu_info()
    budget = _block_budget_bytes(vmem_cap)
    sub = _sublane_mult(itemsize)
    col_bytes = _round_up(n_rows, sub) * itemsize
    tn_max = (budget // max(col_bytes, 1)) // _LANE * _LANE
    if tn_max < _LANE:
        return None, None            # reduced extent too large to keep resident
    m_pad = _round_up(m, _LANE)
    tn = min(tn_max, m_pad)
    if cores > 1 and m_pad > _LANE:
        min_tn = max(_LANE, ((1 << 20) // max(col_bytes, 1)) // _LANE * _LANE)
        steps_cap = _round_up(pl.cdiv(m, 8), _LANE)
        tn = min(tn, max(steps_cap, min_tn))
        tn = min(tn, m_pad)
    if tn >= m:
        tn = m                        # whole lane extent: use exact full dim
    block_bytes = _round_up(n_rows, sub) * tn * itemsize
    return tn, _vmem_limit(vmem_cap, block_bytes)


def _cost(nelems, nbytes, flops_per_elem=15):
    return pl.CostEstimate(flops=int(flops_per_elem * nelems),
                           transcendentals=0,
                           bytes_accessed=int(nbytes))


def _prep(w, clip_val):
    """clip + abs; elementwise in native dtype for bf16, f32 accumulation."""
    if w.dtype not in (jnp.float32, jnp.bfloat16):
        w = w.astype(jnp.float32)
    wc = jnp.clip(w, -clip_val, clip_val)
    absw = jnp.abs(wc).astype(jnp.float32)
    return wc, absw


# ----------------------------------------------------------------------------
# Kernels
# ----------------------------------------------------------------------------
def _twn_row_kernel(w_ref, out_ref, *, n_valid, clip_val):
    """Per-row ternarization; reduction axis in lanes (possibly ragged)."""
    wc, absw = _prep(w_ref[...], clip_val)
    if n_valid != w_ref.shape[-1]:
        # Ragged lane tail: block width > true N.  The undefined out-of-bounds
        # lanes must be excluded from every reduction (keep this mask tied to
        # the block-width check).
        col = lax.broadcasted_iota(jnp.int32, absw.shape, 1)
        absw = jnp.where(col < n_valid, absw, 0.0)
    thres = jnp.sum(absw, axis=-1, keepdims=True) / float(n_valid) * 0.7
    sel = absw > thres                                   # <=> b != 0
    num = jnp.sum(jnp.where(sel, absw, 0.0), axis=-1, keepdims=True)
    den = jnp.sum(jnp.where(sel, 1.0, 0.0), axis=-1, keepdims=True)
    # den == 0 (all-zero row) yields NaN, matching the PyTorch reference.
    alpha = num / den
    signed = jnp.where(wc < 0, -alpha, alpha)
    out_ref[...] = jnp.where(sel, signed, 0.0).astype(out_ref.dtype)


def _twn_col_kernel(w_ref, out_ref, *, n_valid, clip_val):
    """Per-column ternarization; full reduced extent resident in sublanes."""
    wc, absw = _prep(w_ref[...], clip_val)
    # Block rows == full array rows, so no row masking is needed.  Columns are
    # independent, so ragged out-of-bounds lanes only produce garbage outputs
    # that are dropped on writeback.
    thres = jnp.sum(absw, axis=0, keepdims=True) / float(n_valid) * 0.7
    sel = absw > thres
    num = jnp.sum(jnp.where(sel, absw, 0.0), axis=0, keepdims=True)
    den = jnp.sum(jnp.where(sel, 1.0, 0.0), axis=0, keepdims=True)
    alpha = num / den
    signed = jnp.where(wc < 0, -alpha, alpha)
    out_ref[...] = jnp.where(sel, signed, 0.0).astype(out_ref.dtype)


def _twn_tensor_kernel(w_ref, out_ref, *, n_valid, clip_val):
    """Per-tensor ternarization; whole (rows, cols) slab resident."""
    wc, absw = _prep(w_ref[...], clip_val)
    # Explicit zero padding (if any) contributes 0 to every sum and is never
    # selected, so no masking is needed; n_valid is the true element count.
    thres = jnp.sum(absw) / float(n_valid) * 0.7
    sel = absw > thres
    num = jnp.sum(jnp.where(sel, absw, 0.0))
    den = jnp.sum(jnp.where(sel, 1.0, 0.0))
    alpha = num / den
    signed = jnp.where(wc < 0, -alpha, alpha)
    out_ref[...] = jnp.where(sel, signed, 0.0).astype(out_ref.dtype)


# --- streaming per-tensor kernels (3-pass pipeline over row tiles) ----------
def _sumabs_kernel(w_ref, acc_ref, *, rows_valid, tile_rows, clip_val):
    @pl.when(pl.program_id(0) == 0)
    def _():
        acc_ref[...] = jnp.zeros_like(acc_ref)
    _, absw = _prep(w_ref[...], clip_val)
    if rows_valid % tile_rows != 0:
        r = pl.program_id(0) * tile_rows + lax.broadcasted_iota(
            jnp.int32, absw.shape, 0)
        absw = jnp.where(r < rows_valid, absw, 0.0)
    acc_ref[...] = acc_ref[...] + jnp.sum(absw)


def _numden_kernel(thres_ref, w_ref, num_ref, den_ref, *,
                   rows_valid, tile_rows, clip_val):
    @pl.when(pl.program_id(0) == 0)
    def _():
        num_ref[...] = jnp.zeros_like(num_ref)
        den_ref[...] = jnp.zeros_like(den_ref)
    _, absw = _prep(w_ref[...], clip_val)
    if rows_valid % tile_rows != 0:
        r = pl.program_id(0) * tile_rows + lax.broadcasted_iota(
            jnp.int32, absw.shape, 0)
        absw = jnp.where(r < rows_valid, absw, 0.0)
    sel = absw > thres_ref[0, 0]
    num_ref[...] = num_ref[...] + jnp.sum(jnp.where(sel, absw, 0.0))
    den_ref[...] = den_ref[...] + jnp.sum(jnp.where(sel, 1.0, 0.0))


def _scale_kernel(thres_ref, alpha_ref, w_ref, out_ref, *, clip_val):
    wc, absw = _prep(w_ref[...], clip_val)
    sel = absw > thres_ref[0, 0]
    alpha = alpha_ref[0, 0]
    signed = jnp.where(wc < 0, -alpha, alpha)
    out_ref[...] = jnp.where(sel, signed, 0.0).astype(out_ref.dtype)


# ----------------------------------------------------------------------------
# Pure-JAX fallback (only for extreme shapes) -- same math as the reference.
# ----------------------------------------------------------------------------
def _twn_jax(w, dim, clip_val):
    wc = jnp.clip(w, -clip_val, clip_val)
    n = math.prod(w.shape[d] for d in dim)
    thres = jnp.sum(jnp.abs(wc), axis=dim, keepdims=True) / n * 0.7
    b = (wc > thres).astype(w.dtype) - (wc < -thres).astype(w.dtype)
    alpha = (jnp.sum(jnp.abs(b * wc), axis=dim, keepdims=True)
             / jnp.sum(jnp.abs(b), axis=dim, keepdims=True))
    return alpha * b


# ----------------------------------------------------------------------------
# Wrappers
# ----------------------------------------------------------------------------
def _twn_per_row(w2, clip_val):
    """w2: (M, N) with the reduction axis last; returns quantized (M, N)."""
    M, N = w2.shape
    itemsize = w2.dtype.itemsize
    n_pad = max(_LANE, _round_up(N, _LANE))
    vmem_cap, _ = _tpu_info()
    if _sublane_mult(itemsize) * n_pad * itemsize > _block_budget_bytes(vmem_cap):
        # TODO(synk): very wide reduction axes need an N-tiled two-pass kernel
        # (pass 1: per-row sum|wc|; pass 2: ternarize + alpha); fall back.
        return _twn_jax(w2, (1,), clip_val)

    tm, vmem_limit = _pick_row_tile(M, n_pad, itemsize)
    kernel = functools.partial(_twn_row_kernel, n_valid=N, clip_val=clip_val)
    nbytes = w2.size * itemsize
    return pl.pallas_call(
        kernel,
        out_shape=jax.ShapeDtypeStruct((M, N), w2.dtype),
        grid=(pl.cdiv(M, tm),),
        in_specs=[pl.BlockSpec((tm, n_pad), lambda i: (i, 0))],
        out_specs=pl.BlockSpec((tm, n_pad), lambda i: (i, 0)),
        compiler_params=pltpu.CompilerParams(
            dimension_semantics=("parallel",),
            vmem_limit_bytes=vmem_limit),
        cost_estimate=_cost(w2.size, 2 * nbytes),
    )(w2)


def _twn_per_col(w2, clip_val):
    """w2: (N, M) with the reduction axis FIRST (kept dim in lanes)."""
    N, M = w2.shape
    itemsize = w2.dtype.itemsize
    tn, vmem_limit = _pick_col_tile(N, M, itemsize)
    if tn is None:
        return None                  # caller falls back to transpose + row path
    kernel = functools.partial(_twn_col_kernel, n_valid=N, clip_val=clip_val)
    nbytes = w2.size * itemsize
    return pl.pallas_call(
        kernel,
        out_shape=jax.ShapeDtypeStruct((N, M), w2.dtype),
        grid=(pl.cdiv(M, tn),),
        in_specs=[pl.BlockSpec((N, tn), lambda i: (0, i))],
        out_specs=pl.BlockSpec((N, tn), lambda i: (0, i)),
        compiler_params=pltpu.CompilerParams(
            dimension_semantics=("parallel",),
            vmem_limit_bytes=vmem_limit),
        cost_estimate=_cost(w2.size, 2 * nbytes),
    )(w2)


def _choose_slab_cols(total):
    """Pick a lane-dense column count for the flattened per-tensor slab."""
    divisors = [c for c in range(_LANE, min(total, 4096) + 1, _LANE)
                if total % c == 0]
    good = [c for c in divisors if total // c >= _SUBLANE]
    if good:
        return max(good), False
    if divisors:
        return min(divisors), False
    return min(512, _round_up(max(total, 1), _LANE)), True


def _flatten_slab(w, total, cols, need_pad):
    total_pad = _round_up(total, cols)
    flat = w.reshape(-1)
    if need_pad:
        # TODO(synk): zero-padding costs one extra HBM copy; only hit when the
        # element count has no lane-multiple divisor.
        flat = jnp.pad(flat, (0, total_pad - total))
    return flat.reshape(total_pad // cols, cols)


def _twn_per_tensor_resident(w, clip_val):
    """Small tensors: one resident VMEM block, 1 read + 1 write."""
    orig_shape = w.shape
    total = int(math.prod(orig_shape)) if orig_shape else 1
    itemsize = w.dtype.itemsize
    cols, need_pad = _choose_slab_cols(total)
    w2 = _flatten_slab(w, total, cols, need_pad)
    rows = w2.shape[0]

    vmem_cap, _ = _tpu_info()
    vmem_limit = _vmem_limit(vmem_cap, rows * cols * itemsize, n_blocks=2)
    kernel = functools.partial(_twn_tensor_kernel, n_valid=total,
                               clip_val=clip_val)
    out2 = pl.pallas_call(
        kernel,
        out_shape=jax.ShapeDtypeStruct((rows, cols), w.dtype),
        grid=(1,),
        in_specs=[pl.BlockSpec((rows, cols), lambda i: (0, 0))],
        out_specs=pl.BlockSpec((rows, cols), lambda i: (0, 0)),
        compiler_params=pltpu.CompilerParams(
            dimension_semantics=("arbitrary",),
            vmem_limit_bytes=vmem_limit),
        cost_estimate=_cost(total, 2 * total * itemsize),
    )(w2)

    out_flat = out2.reshape(-1)
    if need_pad:
        out_flat = out_flat[:total]
    return out_flat.reshape(orig_shape)


def _twn_per_tensor_streaming(w, clip_val, tile_rows=None):
    """Any-size per-tensor quantization: 3 pipelined passes over row tiles."""
    orig_shape = w.shape
    total = int(math.prod(orig_shape)) if orig_shape else 1
    itemsize = w.dtype.itemsize
    cols, need_pad = _choose_slab_cols(total)
    w2 = _flatten_slab(w, total, cols, need_pad)
    rows = w2.shape[0]

    tm, vmem_limit = _pick_row_tile(rows, cols, itemsize)
    if tile_rows is not None:        # testing hook
        tm = tile_rows
    grid = (pl.cdiv(rows, tm),)
    nbytes = w2.size * itemsize
    tile_spec = pl.BlockSpec((tm, cols), lambda i: (i, 0))
    scalar_spec = pl.BlockSpec((1, 1), lambda i: (0, 0))
    params_red = pltpu.CompilerParams(dimension_semantics=("arbitrary",),
                                      vmem_limit_bytes=vmem_limit)
    params_par = pltpu.CompilerParams(dimension_semantics=("parallel",),
                                      vmem_limit_bytes=vmem_limit)
    f32_11 = jax.ShapeDtypeStruct((1, 1), jnp.float32)

    # Pass 1: global sum |clamp(w)|  ->  threshold.
    sum_abs = pl.pallas_call(
        functools.partial(_sumabs_kernel, rows_valid=rows, tile_rows=tm,
                          clip_val=clip_val),
        out_shape=f32_11, grid=grid,
        in_specs=[tile_spec], out_specs=scalar_spec,
        compiler_params=params_red,
        cost_estimate=_cost(w2.size, nbytes, flops_per_elem=4),
    )(w2)
    thres = sum_abs / float(total) * 0.7

    # Pass 2: num / den of selected magnitudes  ->  alpha.
    num, den = pl.pallas_call(
        functools.partial(_numden_kernel, rows_valid=rows, tile_rows=tm,
                          clip_val=clip_val),
        out_shape=(f32_11, f32_11), grid=grid,
        in_specs=[scalar_spec, tile_spec],
        out_specs=(scalar_spec, scalar_spec),
        compiler_params=params_red,
        cost_estimate=_cost(w2.size, nbytes, flops_per_elem=8),
    )(thres, w2)
    alpha = num / den                # 0/0 -> NaN, matching the reference.

    # Pass 3: write alpha * b.
    out2 = pl.pallas_call(
        functools.partial(_scale_kernel, clip_val=clip_val),
        out_shape=jax.ShapeDtypeStruct((rows, cols), w.dtype),
        grid=grid,
        in_specs=[scalar_spec, scalar_spec, tile_spec],
        out_specs=tile_spec,
        compiler_params=params_par,
        cost_estimate=_cost(w2.size, 2 * nbytes, flops_per_elem=8),
    )(thres, alpha, w2)

    out_flat = out2.reshape(-1)
    if need_pad:
        out_flat = out_flat[:total]
    return out_flat.reshape(orig_shape)


def _twn_per_tensor(w, clip_val):
    total = int(math.prod(w.shape)) if w.shape else 1
    vmem_cap, _ = _tpu_info()
    if total * w.dtype.itemsize <= 2 * _block_budget_bytes(vmem_cap):
        return _twn_per_tensor_resident(w, clip_val)
    return _twn_per_tensor_streaming(w, clip_val)


def twn_quantize(w, dim=None, clip_val=2.5):
    """JAX/Pallas equivalent of TwnQuantizer.forward(w, dim)."""
    ndim = w.ndim
    clip = float(clip_val)

    if dim is None:
        dim = tuple(range(ndim))
    if isinstance(dim, int):
        dim = (dim,)
    dim = tuple(sorted(set(d % ndim for d in dim)))
    keep = tuple(d for d in range(ndim) if d not in dim)

    if not keep:
        return _twn_per_tensor(w, clip)

    M_keep = int(math.prod(w.shape[d] for d in keep))
    N_red = int(math.prod(w.shape[d] for d in dim))

    if dim == tuple(range(ndim - len(dim), ndim)):
        # Reduced dims already trailing: row path, no transpose.
        return _twn_per_row(w.reshape(M_keep, N_red), clip).reshape(w.shape)

    if dim == tuple(range(len(dim))):
        # Reduced dims leading: reduce over sublanes in-layout, no transpose.
        out2 = _twn_per_col(w.reshape(N_red, M_keep), clip)
        if out2 is not None:
            return out2.reshape(w.shape)

    # General case: move reduced dims to the back (costs two extra HBM passes).
    perm = keep + dim
    wp = jnp.transpose(w, perm)
    out2 = _twn_per_row(wp.reshape(M_keep, N_red), clip)
    out = out2.reshape(wp.shape)
    inv_perm = tuple(int(i) for i in np.argsort(perm))
    return jnp.transpose(out, inv_perm)


class TwnQuantizer:
    """Thin module-like wrapper mirroring the PyTorch nn.Module interface."""

    def __init__(self, clip_val=2.5):
        self.clip_val = clip_val

    def __call__(self, w, dim=None):
        # TODO(synk): backward (clip-mask STE) not implemented; forward only.
        return twn_quantize(w, dim=dim, clip_val=self.clip_val)


def _reference(w, dim, clip_val):
    """Pure-JAX reference for verification."""
    if dim is None:
        dim = tuple(range(w.ndim))
    if isinstance(dim, int):
        dim = (dim,)
    dim = tuple(sorted(set(d % w.ndim for d in dim)))
    return _twn_jax(w, dim, clip_val)


if __name__ == "__main__":
    key = jax.random.PRNGKey(0)
    k0, k1 = jax.random.split(key)
    # Small conv-like weight tensor, NCHW-style layout: [2, 4, 16, 16].
    x = jax.random.normal(k0, (2, 4, 16, 16), dtype=jnp.float32) * 1.5

    quantizer = TwnQuantizer(clip_val=2.5)
    checks = []

    # Per-tensor (module default) -> resident single-block kernel.
    checks.append((quantizer(x), _reference(x, None, 2.5)))
    # Per-output-channel (trailing dims) -> row kernel, no transpose.
    checks.append((quantizer(x, dim=(1, 2, 3)), _reference(x, (1, 2, 3), 2.5)))
    # Leading-dim reduction -> column kernel (reduce over sublanes), no transpose.
    checks.append((quantizer(x, dim=0), _reference(x, 0, 2.5)))
    # Middle-dim reduction -> transpose + row kernel (exercises ragged lanes).
    checks.append((quantizer(x, dim=2), _reference(x, 2, 2.5)))

    # Streaming per-tensor pipeline, forced small tiles so several grid steps
    # (and the ragged last tile) are exercised.  Inputs snapped to a 1/8 grid
    # so threshold comparisons cannot flip between summation orders.
    x2 = jnp.round(jax.random.normal(k1, (512, 256), dtype=jnp.float32) * 8.0) / 8.0
    checks.append((_twn_per_tensor_streaming(x2, 2.5, tile_rows=24),
                   _reference(x2, None, 2.5)))

    for got, ref in checks:
        jax.block_until_ready(got)
        np.testing.assert_allclose(np.asarray(got), np.asarray(ref),
                                   rtol=1e-5, atol=1e-5)

    print("KERNEL_OK")
</pallas_src>

<mosaic_0001>
module attributes {stable_mosaic.version = 11 : i64} {
  func.func @_twn_tensor_kernel(%arg0: i32, %arg1: memref<8x256xf32, #tpu.memory_space<vmem>>, %arg2: memref<8x256xf32, #tpu.memory_space<vmem>>) attributes {dimension_semantics = [#tpu.dimension_semantics<arbitrary>], iteration_bounds = array<i64: 1>, scalar_prefetch = 0 : i64, scratch_operands = 0 : i64, tpu.core_type = #tpu.core_type<tc>, window_params = [{pipeline_mode = #tpu.pipeline_mode<synchronous>, transform_indices = @transform_0, window_bounds = array<i64: 8, 256>}, {pipeline_mode = #tpu.pipeline_mode<synchronous>, transform_indices = @transform_1, window_bounds = array<i64: 8, 256>}]} {
    %c0 = arith.constant 0 : index
    %c0_0 = arith.constant 0 : index
    %0 = vector.load %arg1[%c0, %c0_0] : memref<8x256xf32, #tpu.memory_space<vmem>>, vector<8x256xf32>
    %cst = arith.constant -2.500000e+00 : f32
    %cst_1 = arith.constant 2.500000e+00 : f32
    %1 = vector.broadcast %cst : f32 to vector<8x256xf32>
    %2 = arith.maximumf %1, %0 : vector<8x256xf32>
    %3 = vector.broadcast %cst_1 : f32 to vector<8x256xf32>
    %4 = arith.minimumf %3, %2 : vector<8x256xf32>
    %5 = math.absf %4 : vector<8x256xf32>
    %6 = vector.shape_cast %5 : vector<8x256xf32> to vector<1x8x256xf32>
    %cst_2 = arith.constant dense<0.000000e+00> : vector<1xf32>
    %7 = vector.multi_reduction <add>, %6, %cst_2 [1, 2] : vector<1x8x256xf32> to vector<1xf32>
    %8 = vector.shape_cast %7 : vector<1xf32> to vector<1x1x1xf32>
    %9 = vector.extract %8[0, 0, 0] : f32 from vector<1x1x1xf32>
    %cst_3 = arith.constant 2.048000e+03 : f32
    %10 = arith.divf %9, %cst_3 : f32
    %cst_4 = arith.constant 0.699999988 : f32
    %11 = arith.mulf %10, %cst_4 : f32
    %12 = vector.broadcast %11 : f32 to vector<8x256xf32>
    %13 = arith.cmpf ogt, %5, %12 : vector<8x256xf32>
    %cst_5 = arith.constant 0.000000e+00 : f32
    %14 = vector.broadcast %cst_5 : f32 to vector<8x256xf32>
    %15 = arith.select %13, %5, %14 : vector<8x256xi1>, vector<8x256xf32>
    %16 = vector.shape_cast %15 : vector<8x256xf32> to vector<1x8x256xf32>
    %cst_6 = arith.constant dense<0.000000e+00> : vector<1xf32>
    %17 = vector.multi_reduction <add>, %16, %cst_6 [1, 2] : vector<1x8x256xf32> to vector<1xf32>
    %18 = vector.shape_cast %17 : vector<1xf32> to vector<1x1x1xf32>
    %19 = vector.extract %18[0, 0, 0] : f32 from vector<1x1x1xf32>
    %cst_7 = arith.constant 1.000000e+00 : f32
    %cst_8 = arith.constant 0.000000e+00 : f32
    %20 = vector.broadcast %cst_7 : f32 to vector<8x256xf32>
    %21 = vector.broadcast %cst_8 : f32 to vector<8x256xf32>
    %22 = arith.select %13, %20, %21 : vector<8x256xi1>, vector<8x256xf32>
    %23 = vector.shape_cast %22 : vector<8x256xf32> to vector<1x8x256xf32>
    %cst_9 = arith.constant dense<0.000000e+00> : vector<1xf32>
    %24 = vector.multi_reduction <add>, %23, %cst_9 [1, 2] : vector<1x8x256xf32> to vector<1xf32>
    %25 = vector.shape_cast %24 : vector<1xf32> to vector<1x1x1xf32>
    %26 = vector.extract %25[0, 0, 0] : f32 from vector<1x1x1xf32>
    %27 = arith.divf %19, %26 : f32
    %cst_10 = arith.constant 0.000000e+00 : f32
    %28 = vector.broadcast %cst_10 : f32 to vector<8x256xf32>
    %29 = arith.cmpf olt, %4, %28 : vector<8x256xf32>
    %cst_11 = arith.constant 0.000000e+00 : f32
    %30 = arith.subf %cst_11, %27 : f32
    %31 = vector.broadcast %30 : f32 to vector<8x256xf32>
    %32 = vector.broadcast %27 : f32 to vector<8x256xf32>
    %33 = arith.select %29, %31, %32 : vector<8x256xi1>, vector<8x256xf32>
    %cst_12 = arith.constant 0.000000e+00 : f32
    %34 = vector.broadcast %cst_12 : f32 to vector<8x256xf32>
    %35 = arith.select %13, %33, %34 : vector<8x256xi1>, vector<8x256xf32>
    %c0_13 = arith.constant 0 : index
    %c0_14 = arith.constant 0 : index
    %36 = vector.load %arg2[%c0_13, %c0_14] : memref<8x256xf32, #tpu.memory_space<vmem>>, vector<8x256xf32>
    tpu.vector_store %arg2[%c0_13, %c0_14], %35 {strides = array<i32>} : memref<8x256xf32, #tpu.memory_space<vmem>>, vector<8x256xf32>,
    return
  }
  func.func @transform_0(%arg0: i32) -> (i32, i32) {
    %c0_i32 = arith.constant 0 : i32
    %c0_i32_0 = arith.constant 0 : i32
    %c0_i32_1 = arith.constant 0 : i32
    return %c0_i32, %c0_i32_0 : i32, i32
  }
  func.func @transform_1(%arg0: i32) -> (i32, i32) {
    %c0_i32 = arith.constant 0 : i32
    %c0_i32_0 = arith.constant 0 : i32
    %c0_i32_1 = arith.constant 0 : i32
    return %c0_i32, %c0_i32_0 : i32, i32
  }
}

</mosaic_0001>

<llo_original>
// kernel: tpu_custom_call.1
$region0: #{tpu_custom_call.1}
  #allocation0 [shape = 'u32[]', space=smem, size = 0x4, offset = 0x4, fixed_abs, tag = 'smem constant byte address 0x4 - core index']
  #allocation1 [shape = 'u32[72,128]{1,0:T(1,128)}', space=vmem, size = 0x9000, scoped, tag = 'internal scratch']
  %s0 = inlined_call_operand.hbm [shape: f32[8,256], index: 0, kind: input, shape index: {}]
  %s1 = inlined_call_operand.hbm [shape: f32[8,256], index: 1, kind: output, shape index: {}]
  %s2 = sld [smem:[#allocation0]]
  $region18: #{tpu_custom_call.1} parent=0
    _
  %s4 = ssub.s32 1, %s2
  %s5 = scalar_select 0, %s4, %s2
  $region1: #{tpu_custom_call.1} parent=0
    #allocation2 [shape = 'u8[8192]{0}', space=vmem, size = 0x2000, scoped, tag = 'input window, operand 0, single buffered']
    #allocation3 [shape = 's32[1]{0}', space=sflag, size = 0x4, scoped, tag = 'scoped memory for tpu_custom_call.1']
    #allocation4 [shape = 's32[1]{0}', space=sflag, size = 0x4, scoped, tag = 'scoped memory for tpu_custom_call.1']
    #allocation5 [shape = 'u8[8192]{0}', space=vmem, size = 0x2000, scoped, tag = 'output window, operand 0, single buffered']
    %6 = vsyncpa [#allocation3], 0
    %7 = vsyncpa [#allocation4], 0
    // Predicated region
    $region2: #{tpu_custom_call.1} parent=1 // pred_check
      _
    $region3: #{tpu_custom_call.1} parent=1 // pred_check_branch
      %9 = sbr.rel (0) target = $region5
    $region4: #{tpu_custom_call.1} parent=1 // pred_region
      %11 = vsyncadd [#allocation3], 0
      %s13 = sshll.u32 %s0, 4
      %s14 = int_to_ptr.hbm [resolvable:$true] %s13
      %s15 = sshll.u32 [#allocation2], 4
      %s16 = int_to_ptr.vmem [resolvable:$true] %s15
      %18 = dma.hbm_to_vmem [thread:$0]  %s14, 256, %s16, [#allocation3]
    $region5: #{tpu_custom_call.1} parent=1 // pred_fallthru
      _
    // Predicated region
    $region6: #{tpu_custom_call.1} parent=1 // pred_check
      _
    $region7: #{tpu_custom_call.1} parent=1 // pred_check_branch
      %20 = sbr.rel (0) target = $region9
    $region8: #{tpu_custom_call.1} parent=1 // pred_region
      %22 = dma.done [#allocation3], 256
    $region9: #{tpu_custom_call.1} parent=1 // pred_fallthru
      _
    %v23 = vld [vmem:[#allocation2] sm:$0xff]
    %v24 = vld [vmem:[#allocation2 + $0x8] sm:$0xff]
    %v25 = vmax.f32 %v23, -2.5
    %v26 = vmax.f32 %v24, -2.5
    %v27 = vmin.f32 %v25, 2.5
    %v28 = vmin.f32 %v26, 2.5
    %v29 = vand.u32 2147483647, %v27
    %v30 = vand.u32 2147483647, %v28
    %v31 = vadd.f32 %v29, %v30
    %32 = vadd.xlane.f32.xlu0 %v31
    %v33 = vpop.xlane.xlu0 %32
    %v34 = vrot.slane %v33, 4
    %v35 = vadd.f32 %v33, %v34
    %v36 = vrot.slane %v35, 2
    %v37 = vadd.f32 %v35, %v36
    %v38 = vrot.slane %v37, 1
    %v39 = vadd.f32 %v37, %v38
    %s40 = vtos %v39
    %v41 = vrcp.pop 2048.0
    %v42 = vmul.f32 2048.0, %v41
    %v43 = vsub.f32 1.0, %v42
    %v44 = vmul.f32 %v41, %v43
    %v45 = vadd.f32 %v41, %v44
    %vm46 = vweird.f32 %v41
    %v47 = vsel %vm46, %v41, %v45
    %s48 = vtos %v47
    %s49 = smul.f32 %s40, %s48
    %s50 = smul.f32 %s49, 0.7
    %v51 = vstv %s50
    %vm52 = vcmp.gt.f32.partialorder %v29, %v51
    %vm53 = vcmp.gt.f32.partialorder %v30, %v51
    %v54 = vsel %vm52, %v29, 0.0
    %v55 = vsel %vm53, %v30, 0.0
    %v56 = vadd.f32 %v54, %v55
    %57 = vadd.xlane.f32.xlu0 %v56
    %v58 = vpop.xlane.xlu0 %57
    %v59 = vrot.slane %v58, 4
    %v60 = vadd.f32 %v58, %v59
    %v61 = vrot.slane %v60, 2
    %v62 = vadd.f32 %v60, %v61
    %v63 = vrot.slane %v62, 1
    %v64 = vadd.f32 %v62, %v63
    %s65 = vtos %v64
    %v66 = vsel %vm52, 1.0, 0.0
    %v67 = vsel %vm53, 1.0, 0.0
    %v68 = vadd.f32 %v66, %v67
    %69 = vadd.xlane.f32.xlu0 %v68
    %v70 = vpop.xlane.xlu0 %69
    %v71 = vrot.slane %v70, 4
    %v72 = vadd.f32 %v70, %v71
    %v73 = vrot.slane %v72, 2
    %v74 = vadd.f32 %v72, %v73
    %v75 = vrot.slane %v74, 1
    %v76 = vadd.f32 %v74, %v75
    %s77 = vtos %v76
    %v78 = vstv %s77
    %v79 = vrcp.pop %v78
    %v80 = vmul.f32 %v78, %v79
    %v81 = vsub.f32 1.0, %v80
    %v82 = vmul.f32 %v79, %v81
    %v83 = vadd.f32 %v79, %v82
    %vm84 = vweird.f32 %v78
    %vm85 = vweird.f32 %v79
    %vm86 = vmor %vm84, %vm85
    %v87 = vsel %vm86, %v79, %v83
    %v88 = vand.u32 2147483647, %v78
    %vm89 = vcmp.eq.f32.partialorder %v88, 8.507059e+37
    %v90 = vand.u32 %v78, 2147483648
    %v91 = vor.u32 1.1754944e-38, %v90
    %v92 = vsel %vm89, %v91, %v87
    %s93 = vtos %v92
    %s94 = smul.f32 %s65, %s93
    %vm95 = vcmp.lt.f32.partialorder %v27, 0.0
    %vm96 = vcmp.lt.f32.partialorder %v28, 0.0
    %s97 = ssub.f32 0.0, %s94
    %v98 = vstv %s97
    %v99 = vstv %s94
    %v100 = vsel %vm95, %v98, %v99
    %v101 = vsel %vm96, %v98, %v99
    %v102 = vsel %vm52, %v100, 0.0
    %v103 = vsel %vm53, %v101, 0.0
    %104 = vst [vmem:[#allocation5] sm:$0xff] %v102
    %105 = vst [vmem:[#allocation5 + $0x8] sm:$0xff] %v103
    // Predicated region
    $region10: #{tpu_custom_call.1} parent=1 // pred_check
      _
    $region11: #{tpu_custom_call.1} parent=1 // pred_check_branch
      %107 = sbr.rel (0) target = $region13
    $region12: #{tpu_custom_call.1} parent=1 // pred_region
      %109 = vsyncadd [#allocation4], 0
      %s111 = sshll.u32 [#allocation5], 4
      %s112 = int_to_ptr.vmem [resolvable:$true] %s111
      %s113 = sshll.u32 %s1, 4
      %s114 = int_to_ptr.hbm [resolvable:$true] %s113
      %116 = dma.vmem_to_hbm [thread:$0]  %s112, 256, %s114, [#allocation4]
    $region13: #{tpu_custom_call.1} parent=1 // pred_fallthru
      _
    // Predicated region
    $region14: #{tpu_custom_call.1} parent=1 // pred_check
      _
    $region15: #{tpu_custom_call.1} parent=1 // pred_check_branch
      %118 = sbr.rel (0) target = $region17
    $region16: #{tpu_custom_call.1} parent=1 // pred_region
      %120 = dma.done [#allocation4], 256
    $region17: #{tpu_custom_call.1} parent=1 // pred_fallthru
      _
    %121 = vsyncpa [#allocation3], 1
    %122 = vsyncpa [#allocation4], 1

</llo_original>
